<compile_context>
chip_gen: v7x
topology: tpu7x:2x2x1
jax: 0.10.0
libtpu: 0.0.40
codegen_flags: <defaults>
</compile_context>

<pallas_src>
import functools
import math

import jax
import jax.numpy as jnp
from jax import lax
from jax.experimental import pallas as pl
from jax.experimental.pallas import tpu as pltpu

NEG = -1.0e30  # stand-in for -inf in log-space DP (avoids inf-inf NaNs)


def _round_up(x, m):
    return -(-x // m) * m


def _vmem_budget_bytes():
    """~85% of this chip's VMEM (v5e/v6e: 128 MiB, v7x: 64 MiB), with a safe fallback."""
    try:
        cap = int(pltpu.get_tpu_info().vmem_capacity_bytes)
    except Exception:
        cap = 64 * 1024 * 1024
    return max(32 * 1024 * 1024, int(cap * 0.85))


# ---------------------------------------------------------------------------
# Kernel 1: cross-entropy (NLLLoss w/ ignore_index OR label-smoothed KLDivLoss),
# reduction='sum'.  Grid = (row tiles [parallel], vocab tiles [arbitrary]).
# ---------------------------------------------------------------------------
def _xent_kernel(lp_ref, tgt_ref, out_ref, acc_ref, *, pad_index, smoothing,
                 vocab_size, n_rows, ragged_rows, ragged_vocab):
    j = pl.program_id(1)           # vocab tile (reduction axis, innermost)
    nj = pl.num_programs(1)

    @pl.when(j == 0)
    def _():
        acc_ref[...] = jnp.zeros_like(acc_ref)

    lp = lp_ref[...].astype(jnp.float32)          # (tm, tv) log-prob slice
    tgt = tgt_ref[...]                            # (tm, 1) int32
    tm, tv = lp.shape
    v0 = j * tv                                   # global column offset of this slice

    col = lax.broadcasted_iota(jnp.int32, (1, tv), 1) + v0      # (1, tv) global col ids
    is_tgt = col == tgt                                         # (tm, tv)

    valid_row = tgt != pad_index                                # (tm, 1)
    if ragged_rows:
        row = lax.broadcasted_iota(jnp.int32, (tm, 1), 0) + pl.program_id(0) * tm
        valid_row = valid_row & (row < n_rows)

    if smoothing <= 0.0:
        # nn.NLLLoss(ignore_index=pad_index, reduction='sum')
        lp_tgt = jnp.sum(jnp.where(is_tgt, lp, 0.0), axis=1, keepdims=True)
        row_loss = jnp.where(valid_row, -lp_tgt, 0.0)
    else:
        # nn.KLDivLoss(reduction='sum') against smoothed target distributions.
        s = float(smoothing)
        u = s / (vocab_size - 2)
        u_log_u = u * math.log(u)                               # static consts
        oms_log_oms = (1.0 - s) * math.log(1.0 - s) if s < 1.0 else 0.0

        # Single weighted reduction over the tile: sum_slice(d * lp).
        dead = col == pad_index
        if ragged_vocab:
            dead = dead | (col >= vocab_size)
        w = jnp.where(is_tgt, 1.0 - s, u)                       # (tm, tv)
        w = jnp.where(dead, 0.0, w)
        cross = jnp.sum(w * lp, axis=1, keepdims=True)          # (tm, 1)

        # sum_slice(d * log d) from per-row range test + scalar bookkeeping.
        f_t = ((tgt >= v0) & (tgt < v0 + tv)).astype(jnp.float32)            # (tm, 1)
        f_p = jnp.logical_and(pad_index >= v0, pad_index < v0 + tv).astype(jnp.float32)
        if ragged_vocab:
            n_cols = jnp.clip(vocab_size - v0, 0, tv).astype(jnp.float32)
        else:
            n_cols = float(tv)
        ent = (n_cols - f_t - f_p) * u_log_u + f_t * oms_log_oms             # (tm, 1)
        row_loss = jnp.where(valid_row, ent - cross, 0.0)

    acc_ref[...] += row_loss

    @pl.when(j == nj - 1)
    def _():
        lane = lax.broadcasted_iota(jnp.int32, (1, 128), 1)
        out_ref[...] = jnp.where(lane == 0, jnp.sum(acc_ref[...]), 0.0)


def xent_loss(log_probs_flat, targets_flat, *, pad_index, smoothing):
    n, vocab = log_probs_flat.shape
    if smoothing > 0.0:
        assert vocab > 2, "label smoothing requires vocab_size > 2"
        assert smoothing < 1.0, "label smoothing must be < 1.0"
    tgt = targets_flat.reshape(n, 1).astype(jnp.int32)

    budget = _vmem_budget_bytes()
    itemsize = jnp.dtype(log_probs_flat.dtype).itemsize

    # Row tile: full when small, else 512.  Vocab tile: up to 4096, keeping the
    # double-buffered log-prob block under ~30% of the VMEM budget.
    tm = n if n <= 512 else 512
    tv_budget = (budget * 3 // 10) // (2 * tm * itemsize)
    tv_cap = min(4096, max(128, (tv_budget // 128) * 128))
    tv = vocab if vocab <= tv_cap else tv_cap

    gr = pl.cdiv(n, tm)
    gv = pl.cdiv(vocab, tv)
    ragged_rows = (n % tm) != 0
    ragged_vocab = (vocab % tv) != 0

    kernel = functools.partial(
        _xent_kernel, pad_index=pad_index, smoothing=smoothing,
        vocab_size=vocab, n_rows=n,
        ragged_rows=ragged_rows, ragged_vocab=ragged_vocab)

    out = pl.pallas_call(
        kernel,
        out_shape=jax.ShapeDtypeStruct((1, gr * 128), jnp.float32),
        grid_spec=pltpu.PrefetchScalarGridSpec(
            num_scalar_prefetch=0,
            grid=(gr, gv),
            in_specs=[
                pl.BlockSpec((tm, tv), lambda i, j: (i, j)),
                pl.BlockSpec((tm, 1), lambda i, j: (i, 0)),
            ],
            out_specs=pl.BlockSpec((1, 128), lambda i, j: (0, i)),
            scratch_shapes=[pltpu.VMEM((tm, 1), jnp.float32)],
        ),
        compiler_params=pltpu.CompilerParams(
            dimension_semantics=("parallel", "arbitrary"),
            vmem_limit_bytes=budget),
    )(log_probs_flat, tgt)
    return jnp.sum(out)


# ---------------------------------------------------------------------------
# Kernel 2: CTC loss (blank=bos_index, reduction='sum', zero_infinity=True).
# Batch-tiled ("parallel") grid; gather hoisted to pre-loop MXU matmuls into a
# batch-major scratch, re-laid out time-major so the serial alpha DP only does
# one aligned (bb, E) load per step.
# ---------------------------------------------------------------------------
def _ctc_kernel(lp_ref, trg_ref, il_ref, tl_ref, out_ref, ga_ref, gt_ref, *,
                blank_index, ext_pad, t_pad, bb_pad, c_chunk):
    bb, t_max, c = lp_ref.shape
    s = trg_ref.shape[1]
    E = ext_pad

    trg = trg_ref[...]                          # (bb, S) int32
    il = il_ref[...]                            # (bb, 1) int32 input lengths
    tl = tl_ref[...]                            # (bb, 1) int32 target lengths

    # Extended labels l' = [blank, y1, blank, y2, ..., yL, blank], lane-padded to E.
    # O(E) data-dependent work: static (S, E) 0/1 interleave matrix + one exact matmul.
    e_idx = lax.broadcasted_iota(jnp.int32, (1, E), 1)
    is_odd = (e_idx % 2) == 1
    tpos = (e_idx - 1) // 2
    j_iota = lax.broadcasted_iota(jnp.int32, (s, E), 0)
    interleave = jnp.where(is_odd & (j_iota == tpos), 1.0, 0.0)              # (S, E) static
    lbl = jnp.dot(trg.astype(jnp.float32), interleave,
                  preferred_element_type=jnp.float32,
                  precision=lax.Precision.HIGHEST).astype(jnp.int32)         # exact for ids < 2**24
    ext = jnp.where(is_odd, lbl, blank_index)                                # (bb, E)

    # skip transition allowed iff l'[e] != blank and l'[e] != l'[e-2]
    ext_m2 = pltpu.roll(ext, 2, axis=1)
    can_skip = (e_idx >= 2) & (ext != blank_index) & (ext != ext_m2)

    # Hoisted gather: ga[b*t_pad + t, e] = lp[b, t, ext[b, e]] via (T,Cc)x(Cc,E) MXU
    # matmuls, chunked over the class dim to bound one-hot vreg/VMEM pressure.
    use_bf16 = lp_ref.dtype == jnp.bfloat16
    for b in range(bb):
        acc = None
        for c0 in range(0, c, c_chunk):
            cc = min(c_chunk, c - c0)
            c_io = lax.broadcasted_iota(jnp.int32, (cc, E), 0) + c0
            oh = c_io == ext[b:b + 1, :]                                     # (Cc, E) one-hot
            lp_b = lp_ref[b, :, c0:c0 + cc]                                  # (T, Cc)
            if use_bf16:
                part = jnp.dot(lp_b, oh.astype(jnp.bfloat16),
                               preferred_element_type=jnp.float32)
            else:
                part = jnp.dot(lp_b.astype(jnp.float32), oh.astype(jnp.float32),
                               preferred_element_type=jnp.float32,
                               precision=lax.Precision.HIGHEST)              # exact gather
            acc = part if acc is None else acc + part
        ga_ref[b * t_pad:b * t_pad + t_max, :] = acc

    # Re-layout to time-major rows (t*bb_pad + b) so every DP step reads one aligned
    # (bb, E) tile; the strided sublane reads happen here, off the serial DP chain.
    def _relayout(t, carry):
        dst = pl.multiple_of(t * bb_pad, 8)
        gt_ref[pl.ds(dst, bb), :] = ga_ref[pl.ds(t, bb, stride=t_pad), :]
        return carry

    lax.fori_loop(0, t_max, _relayout, 0, unroll=4)

    def g_at(t):
        return gt_ref[pl.ds(pl.multiple_of(t * bb_pad, 8), bb), :]           # (bb, E) single vld

    alpha0 = jnp.where(e_idx <= 1, gt_ref[pl.ds(0, bb), :], NEG)             # t = 0 init

    def step(t, alpha):
        a1 = jnp.where(e_idx >= 1, pltpu.roll(alpha, 1, axis=1), NEG)
        a2 = jnp.where(can_skip, pltpu.roll(alpha, 2, axis=1), NEG)
        m = jnp.maximum(jnp.maximum(alpha, a1), a2)
        lse = m + jnp.log(jnp.exp(alpha - m) + jnp.exp(a1 - m) + jnp.exp(a2 - m))
        new_alpha = lse + g_at(t)
        return jnp.where(t < il, new_alpha, alpha)                           # freeze past input_length

    alpha = lax.fori_loop(1, t_max, step, alpha0, unroll=8)

    # log p(y|x) = logsumexp(alpha[2L], alpha[2L-1]) per example
    final_mask = (e_idx == 2 * tl) | (e_idx == 2 * tl - 1)
    fin = jnp.where(final_mask, alpha, NEG)
    m = jnp.max(fin, axis=1, keepdims=True)
    ll = m + jnp.log(jnp.sum(jnp.exp(fin - m), axis=1, keepdims=True))       # (bb, 1)
    per_ex = jnp.where(ll < -1.0e20, 0.0, -ll)                               # zero_infinity=True

    lane = lax.broadcasted_iota(jnp.int32, (1, 128), 1)
    out_ref[...] = jnp.where(lane == 0, jnp.sum(per_ex), 0.0)


def _pick_ctc_bb(b, t_max, c, ext_pad, itemsize, budget):
    if b <= 8:
        return b
    t_pad = _round_up(t_max, 8)

    def fits(bb):
        bb_pad = _round_up(bb, 8)
        need = (2 * bb * t_max * c * itemsize        # double-buffered lp block
                + bb * t_pad * ext_pad * 4           # batch-major gather scratch
                + t_max * bb_pad * ext_pad * 4       # time-major DP scratch
                + (4 << 20))                         # one-hot / compiler headroom
        return need <= budget

    # Prefer larger batch tiles (more independent rows per serial DP step) but keep
    # nb >= 2 so the "parallel" batch axis can feed both TensorCores on v7x.
    for cand in (32, 16, 8):
        if b % cand == 0 and b // cand >= 2 and fits(cand):
            return cand
    if b % 8 == 0:
        return 8
    # TODO(synk): batches > 8 not divisible by 8 fall back to a single full-batch block.
    return b


def ctc_loss(ctc_log_probs, trg, input_lengths, target_lengths, *, blank_index):
    b, t_max, c = ctc_log_probs.shape
    s = trg.shape[1]
    ext_pad = 128 * pl.cdiv(2 * s + 1, 128)

    budget = _vmem_budget_bytes()
    itemsize = jnp.dtype(ctc_log_probs.dtype).itemsize
    bb = _pick_ctc_bb(b, t_max, c, ext_pad, itemsize, budget)
    nb = b // bb
    t_pad = _round_up(t_max, 8)
    bb_pad = _round_up(bb, 8)
    c_chunk = c if c <= 2048 else 2048

    kernel = functools.partial(
        _ctc_kernel, blank_index=blank_index, ext_pad=ext_pad,
        t_pad=t_pad, bb_pad=bb_pad, c_chunk=c_chunk)

    out = pl.pallas_call(
        kernel,
        out_shape=jax.ShapeDtypeStruct((1, nb * 128), jnp.float32),
        grid_spec=pltpu.PrefetchScalarGridSpec(
            num_scalar_prefetch=0,
            grid=(nb,),
            in_specs=[
                pl.BlockSpec((bb, t_max, c), lambda i: (i, 0, 0)),   # batch-major, no XLA transpose
                pl.BlockSpec((bb, s), lambda i: (i, 0)),
                pl.BlockSpec((bb, 1), lambda i: (i, 0)),
                pl.BlockSpec((bb, 1), lambda i: (i, 0)),
            ],
            out_specs=pl.BlockSpec((1, 128), lambda i: (0, i)),
            scratch_shapes=[
                pltpu.VMEM((bb * t_pad, ext_pad), jnp.float32),      # batch-major gather scratch
                pltpu.VMEM((t_max * bb_pad, ext_pad), jnp.float32),  # time-major DP scratch
            ],
        ),
        compiler_params=pltpu.CompilerParams(
            dimension_semantics=("parallel",),
            vmem_limit_bytes=budget),
    )(ctc_log_probs,
      trg.astype(jnp.int32),
      input_lengths.reshape(b, 1).astype(jnp.int32),
      target_lengths.reshape(b, 1).astype(jnp.int32))
    return jnp.sum(out)


# ---------------------------------------------------------------------------
# XentCTCLoss.forward equivalent
# ---------------------------------------------------------------------------
def xent_ctc_loss(log_probs, trg, trg_length, src_mask, ctc_log_probs, *,
                  pad_index, bos_index, smoothing=0.0, ctc_weight=0.3):
    b, sq, vocab = log_probs.shape
    lp_flat = log_probs.reshape(b * sq, vocab)
    tgt_flat = trg.reshape(b * sq)
    xent = xent_loss(lp_flat, tgt_flat, pad_index=pad_index, smoothing=smoothing)
    input_lengths = jnp.sum(src_mask[:, 0, :].astype(jnp.int32), axis=1)
    ctc = ctc_loss(ctc_log_probs, trg, input_lengths, trg_length, blank_index=bos_index)
    total = (1.0 - ctc_weight) * xent + ctc_weight * ctc
    return total, xent, ctc


if __name__ == "__main__":
    B, SQ, T, V = 2, 8, 16, 32
    pad_index, bos_index = 1, 2
    smoothing, ctc_weight = 0.1, 0.3

    key = jax.random.PRNGKey(0)
    k1, k2, k3 = jax.random.split(key, 3)
    log_probs = jax.nn.log_softmax(jax.random.normal(k1, (B, SQ, V), jnp.float32), axis=-1)
    ctc_log_probs = jax.nn.log_softmax(jax.random.normal(k2, (B, T, V), jnp.float32), axis=-1)

    trg_length = jnp.array([SQ, 6], dtype=jnp.int32)
    trg = jax.random.randint(k3, (B, SQ), 3, V, dtype=jnp.int32)  # avoid pad/bos tokens
    pos = jnp.arange(SQ)[None, :]
    trg = jnp.where(pos < trg_length[:, None], trg, pad_index)    # pad beyond target length

    src_lengths = jnp.array([T, 12], dtype=jnp.int32)
    src_mask = jnp.arange(T)[None, None, :] < src_lengths[:, None, None]  # (B, 1, T) bool

    total, xent, ctc = xent_ctc_loss(
        log_probs, trg, trg_length, src_mask, ctc_log_probs,
        pad_index=pad_index, bos_index=bos_index,
        smoothing=smoothing, ctc_weight=ctc_weight)
    jax.block_until_ready((total, xent, ctc))

    assert not bool(jnp.isnan(total)), "loss has to be non-NaN value."
    assert float(total) >= 0.0, "loss has to be non-negative."
    print("KERNEL_OK")
</pallas_src>

<mosaic_0001>
module attributes {stable_mosaic.version = 11 : i64} {
  func.func @_xent_kernel(%arg0: i32, %arg1: i32, %arg2: memref<16x32xf32, #tpu.memory_space<vmem>>, %arg3: memref<16x1xi32, #tpu.memory_space<vmem>>, %arg4: memref<1x128xf32, #tpu.memory_space<vmem>>, %arg5: memref<16x1xf32, #tpu.memory_space<vmem>>) attributes {dimension_semantics = [#tpu.dimension_semantics<parallel>, #tpu.dimension_semantics<arbitrary>], iteration_bounds = array<i64: 1, 1>, scalar_prefetch = 0 : i64, scratch_operands = 1 : i64, tpu.core_type = #tpu.core_type<tc>, window_params = [{transform_indices = @transform_0, window_bounds = array<i64: 16, 32>}, {transform_indices = @transform_1, window_bounds = array<i64: 16, 1>}, {transform_indices = @transform_2, window_bounds = array<i64: 1, 128>}]} {
    %c0_i32 = arith.constant 0 : i32
    %0 = arith.cmpi eq, %arg1, %c0_i32 : i32
    %1 = arith.extui %0 : i1 to i32
    %c0_i32_0 = arith.constant 0 : i32
    %2 = arith.cmpi ne, %1, %c0_i32_0 : i32
    scf.if %2 {
      %cst_22 = arith.constant 0.000000e+00 : f32
      %58 = vector.broadcast %cst_22 : f32 to vector<16x1xf32>
      %c0_23 = arith.constant 0 : index
      %c0_24 = arith.constant 0 : index
      %59 = vector.load %arg5[%c0_23, %c0_24] : memref<16x1xf32, #tpu.memory_space<vmem>>, vector<16x1xf32>
      tpu.vector_store %arg5[%c0_23, %c0_24], %58 {strides = array<i32>} : memref<16x1xf32, #tpu.memory_space<vmem>>, vector<16x1xf32>,
    } else {
    }
    %c0 = arith.constant 0 : index
    %c0_1 = arith.constant 0 : index
    %3 = vector.load %arg2[%c0, %c0_1] : memref<16x32xf32, #tpu.memory_space<vmem>>, vector<16x32xf32>
    %c0_2 = arith.constant 0 : index
    %c0_3 = arith.constant 0 : index
    %4 = vector.load %arg3[%c0_2, %c0_3] : memref<16x1xi32, #tpu.memory_space<vmem>>, vector<16x1xi32>
    %c32_i32 = arith.constant 32 : i32
    %5 = arith.muli %arg1, %c32_i32 : i32
    %6 = tpu.iota {dimensions = array<i32: 1>} : vector<1x32xi32>
    %7 = vector.broadcast %5 : i32 to vector<1x32xi32>
    %8 = arith.addi %6, %7 : vector<1x32xi32>
    %9 = vector.broadcast %8 : vector<1x32xi32> to vector<16x32xi32>
    %10 = vector.broadcast %4 : vector<16x1xi32> to vector<16x32xi32>
    %11 = arith.cmpi eq, %9, %10 : vector<16x32xi32>
    %c1_i32 = arith.constant 1 : i32
    %12 = vector.broadcast %c1_i32 : i32 to vector<16x1xi32>
    %13 = arith.cmpi ne, %4, %12 : vector<16x1xi32>
    %c1_i32_4 = arith.constant 1 : i32
    %14 = vector.broadcast %c1_i32_4 : i32 to vector<1x32xi32>
    %15 = arith.cmpi eq, %8, %14 : vector<1x32xi32>
    %cst = arith.constant 0.899999976 : f32
    %cst_5 = arith.constant 0.00333333341 : f32
    %16 = vector.broadcast %cst : f32 to vector<16x32xf32>
    %17 = vector.broadcast %cst_5 : f32 to vector<16x32xf32>
    %18 = arith.select %11, %16, %17 : vector<16x32xi1>, vector<16x32xf32>
    %cst_6 = arith.constant 0.000000e+00 : f32
    %19 = vector.shape_cast %15 : vector<1x32xi1> to vector<1x32xi1>
    %20 = vector.broadcast %19 : vector<1x32xi1> to vector<16x32xi1>
    %21 = vector.broadcast %cst_6 : f32 to vector<16x32xf32>
    %22 = arith.select %20, %21, %18 : vector<16x32xi1>, vector<16x32xf32>
    %23 = arith.mulf %22, %3 : vector<16x32xf32>
    %cst_7 = arith.constant dense<0.000000e+00> : vector<16xf32>
    %24 = vector.multi_reduction <add>, %23, %cst_7 [1] : vector<16x32xf32> to vector<16xf32>
    %25 = vector.shape_cast %24 : vector<16xf32> to vector<16x1xf32>
    %26 = vector.broadcast %5 : i32 to vector<16x1xi32>
    %27 = arith.cmpi sge, %4, %26 : vector<16x1xi32>
    %c32_i32_8 = arith.constant 32 : i32
    %28 = arith.addi %5, %c32_i32_8 : i32
    %29 = vector.broadcast %28 : i32 to vector<16x1xi32>
    %30 = arith.cmpi slt, %4, %29 : vector<16x1xi32>
    %31 = arith.andi %27, %30 : vector<16x1xi1>
    %32 = arith.extui %31 : vector<16x1xi1> to vector<16x1xi32>
    %33 = arith.sitofp %32 : vector<16x1xi32> to vector<16x1xf32>
    %c1_i32_9 = arith.constant 1 : i32
    %34 = arith.cmpi sle, %5, %c1_i32_9 : i32
    %c32_i32_10 = arith.constant 32 : i32
    %35 = arith.addi %5, %c32_i32_10 : i32
    %c1_i32_11 = arith.constant 1 : i32
    %36 = arith.cmpi sgt, %35, %c1_i32_11 : i32
    %37 = arith.andi %34, %36 : i1
    %38 = arith.extui %37 : i1 to i32
    %39 = arith.sitofp %38 : i32 to f32
    %cst_12 = arith.constant 3.200000e+01 : f32
    %40 = vector.broadcast %cst_12 : f32 to vector<16x1xf32>
    %41 = arith.subf %40, %33 : vector<16x1xf32>
    %42 = vector.broadcast %39 : f32 to vector<16x1xf32>
    %43 = arith.subf %41, %42 : vector<16x1xf32>
    %cst_13 = arith.constant -0.0190126076 : f32
    %44 = vector.broadcast %cst_13 : f32 to vector<16x1xf32>
    %45 = arith.mulf %43, %44 : vector<16x1xf32>
    %cst_14 = arith.constant -0.0948244631 : f32
    %46 = vector.broadcast %cst_14 : f32 to vector<16x1xf32>
    %47 = arith.mulf %33, %46 : vector<16x1xf32>
    %48 = arith.addf %45, %47 : vector<16x1xf32>
    %49 = arith.subf %48, %25 : vector<16x1xf32>
    %cst_15 = arith.constant 0.000000e+00 : f32
    %50 = vector.broadcast %cst_15 : f32 to vector<16x1xf32>
    %51 = arith.select %13, %49, %50 : vector<16x1xi1>, vector<16x1xf32>
    %c0_16 = arith.constant 0 : index
    %c0_17 = arith.constant 0 : index
    %52 = vector.load %arg5[%c0_16, %c0_17] : memref<16x1xf32, #tpu.memory_space<vmem>>, vector<16x1xf32>
    %53 = arith.addf %52, %51 : vector<16x1xf32>
    %c0_18 = arith.constant 0 : index
    %c0_19 = arith.constant 0 : index
    %54 = vector.load %arg5[%c0_18, %c0_19] : memref<16x1xf32, #tpu.memory_space<vmem>>, vector<16x1xf32>
    tpu.vector_store %arg5[%c0_18, %c0_19], %53 {strides = array<i32>} : memref<16x1xf32, #tpu.memory_space<vmem>>, vector<16x1xf32>,
    %c0_i32_20 = arith.constant 0 : i32
    %55 = arith.cmpi eq, %arg1, %c0_i32_20 : i32
    %56 = arith.extui %55 : i1 to i32
    %c0_i32_21 = arith.constant 0 : i32
    %57 = arith.cmpi ne, %56, %c0_i32_21 : i32
    scf.if %57 {
      %58 = tpu.iota {dimensions = array<i32: 1>} : vector<1x128xi32>
      %c0_i32_22 = arith.constant 0 : i32
      %59 = vector.broadcast %c0_i32_22 : i32 to vector<1x128xi32>
      %60 = arith.cmpi eq, %58, %59 : vector<1x128xi32>
      %c0_23 = arith.constant 0 : index
      %c0_24 = arith.constant 0 : index
      %61 = vector.load %arg5[%c0_23, %c0_24] : memref<16x1xf32, #tpu.memory_space<vmem>>, vector<16x1xf32>
      %62 = vector.shape_cast %61 : vector<16x1xf32> to vector<1x16x1xf32>
      %cst_25 = arith.constant dense<0.000000e+00> : vector<1xf32>
      %63 = vector.multi_reduction <add>, %62, %cst_25 [1, 2] : vector<1x16x1xf32> to vector<1xf32>
      %64 = vector.shape_cast %63 : vector<1xf32> to vector<1x1x1xf32>
      %65 = vector.extract %64[0, 0, 0] : f32 from vector<1x1x1xf32>
      %cst_26 = arith.constant 0.000000e+00 : f32
      %66 = vector.broadcast %65 : f32 to vector<1x128xf32>
      %67 = vector.broadcast %cst_26 : f32 to vector<1x128xf32>
      %68 = arith.select %60, %66, %67 : vector<1x128xi1>, vector<1x128xf32>
      %c0_27 = arith.constant 0 : index
      %c0_28 = arith.constant 0 : index
      %69 = vector.load %arg4[%c0_27, %c0_28] : memref<1x128xf32, #tpu.memory_space<vmem>>, vector<1x128xf32>
      tpu.vector_store %arg4[%c0_27, %c0_28], %68 {strides = array<i32>} : memref<1x128xf32, #tpu.memory_space<vmem>>, vector<1x128xf32>,
    } else {
    }
    return
  }
  func.func @transform_0(%arg0: i32, %arg1: i32) -> (i32, i32) {
    %c0_i32 = arith.constant 0 : i32
    return %arg0, %arg1 : i32, i32
  }
  func.func @transform_1(%arg0: i32, %arg1: i32) -> (i32, i32) {
    %c0_i32 = arith.constant 0 : i32
    %c0_i32_0 = arith.constant 0 : i32
    return %arg0, %c0_i32 : i32, i32
  }
  func.func @transform_2(%arg0: i32, %arg1: i32) -> (i32, i32) {
    %c0_i32 = arith.constant 0 : i32
    %c0_i32_0 = arith.constant 0 : i32
    return %c0_i32, %arg0 : i32, i32
  }
}

</mosaic_0001>

<llo_original>
// kernel: tpu_custom_call.1
$region0: #{tpu_custom_call.1}
  #allocation0 [shape = 'u32[]', space=smem, size = 0x4, offset = 0x4, fixed_abs, tag = 'smem constant byte address 0x4 - core index']
  #allocation1 [shape = 'u32[144,128]{1,0:T(1,128)}', space=vmem, size = 0x12000, scoped, tag = 'internal scratch']
  #allocation2 [shape = 'f32[16,1]{1,0:T(8,128)}', space=vmem, size = 0x2000, scoped, tag = 'scratch operand']
  %s0 = inlined_call_operand.vmem [shape: f32[16,32], index: 0, kind: input, shape index: {}]
  %s1 = inlined_call_operand.vmem [shape: s32[16,1], index: 1, kind: input, shape index: {}]
  %s2 = inlined_call_operand.hbm [shape: f32[1,128], index: 2, kind: output, shape index: {}]
  %s3 = sld [smem:[#allocation0]]
  $region26: #{tpu_custom_call.1} parent=0
    _
  %s5 = ssub.s32 1, %s3
  %s6 = scalar_select 0, %s5, %s3
  $region1: #{tpu_custom_call.1} parent=0
    #allocation3 [shape = 'u8[512]{0}', space=vmem, size = 0x400, scoped, tag = 'output window, operand 0, single buffered']
    #allocation4 [shape = 's32[1]{0}', space=sflag, size = 0x4, scoped, tag = 'scoped memory for tpu_custom_call.1']
    %7 = vsyncpa [#allocation4], 0
    // Predicated region
    $region2: #{tpu_custom_call.1} parent=1 // pred_check
      _
    $region3: #{tpu_custom_call.1} parent=1 // pred_check_branch
      %9 = sbr.rel (0) target = $region5
    $region4: #{tpu_custom_call.1} parent=1 // pred_region
      _
    $region5: #{tpu_custom_call.1} parent=1 // pred_fallthru
      _
    // Predicated region
    $region6: #{tpu_custom_call.1} parent=1 // pred_check
      _
    $region7: #{tpu_custom_call.1} parent=1 // pred_check_branch
      %11 = sbr.rel (0) target = $region9
    $region8: #{tpu_custom_call.1} parent=1 // pred_region
      _
    $region9: #{tpu_custom_call.1} parent=1 // pred_fallthru
      _
    %p12 = scmp.eq.s32.totalorder 0, 0
    // Predicated region
    $region10: #{tpu_custom_call.1} parent=1 // pred_check
      %p13 = pneg %p12
    $region11: #{tpu_custom_call.1} parent=1 // pred_check_branch
      %15 = sbr.rel (%p13) target = $region13
    $region12: #{tpu_custom_call.1} parent=1 // pred_region
      %vm16 = vcmask 7168
      %17 = vst.msk [vmem:[#allocation2] sm:$0xff] %vm16, 0.0
      %18 = vst.msk [vmem:[#allocation2 + $0x8] sm:$0xff] %vm16, 0.0
    $region13: #{tpu_custom_call.1} parent=1 // pred_fallthru
      _
    %v19 = vld [vmem:[%s0] sm:$0xff]
    %v20 = vld [vmem:[%s0 + $0x8] sm:$0xff]
    %v21 = vld [vmem:[%s1] sm:$0xff]
    %v22 = vld [vmem:[%s1 + $0x8] sm:$0xff]
    %s23 = smul.u32 0, 32
    %v24 = vlaneseq
    %v25 = vand.u32 %v24, 127
    %v26 = vstv %s23
    %v27 = vadd.s32 %v25, %v26
    %28 = vset.pattern.permute.xlu0 0
    %29 = vperm.xlu0 %28, %v21
    %v30 = vpop.permute.xlu0 %29
    %31 = vset.pattern.permute.xlu0 0
    %32 = vperm.xlu0 %31, %v22
    %v33 = vpop.permute.xlu0 %32
    %vm34 = vcmp.eq.s32.totalorder %v27, %v30
    %vm35 = vcmp.eq.s32.totalorder %v27, %v33
    %vm36 = vcmp.ne.s32.totalorder %v21, 1
    %vm37 = vcmp.ne.s32.totalorder %v22, 1
    %vm38 = vcmp.eq.s32.totalorder %v27, 1
    %v39 = vsel %vm34, 0.9, 0.0033333334
    %v40 = vsel %vm35, 0.9, 0.0033333334
    %v41 = vsel %vm38, 1, 0
    %vm42 = vcmp.eq.s32.totalorder %v41, 1
    %v43 = vsel %vm42, 0.0, %v39
    %v44 = vsel %vm42, 0.0, %v40
    %v45 = vmul.f32 %v43, %v19
    %v46 = vmul.f32 %v44, %v20
    %vm47 = vcmask 261120
    %v48 = vsel %vm47, %v45, 0.0
    %49 = vadd.xlane.f32.xlu0 %v48
    %v50 = vpop.xlane.xlu0 %49
    %v51 = vsel %vm47, %v46, 0.0
    %52 = vadd.xlane.f32.xlu0 %v51
    %v53 = vpop.xlane.xlu0 %52
    %vm54 = vcmp.ge.s32.totalorder %v21, %v26
    %vm55 = vcmp.ge.s32.totalorder %v22, %v26
    %s56 = sadd.s32 %s23, 32
    %v57 = vstv %s56
    %vm58 = vcmp.lt.s32.totalorder %v21, %v57
    %vm59 = vcmp.lt.s32.totalorder %v22, %v57
    %vm60 = vmand %vm54, %vm58
    %vm61 = vmand %vm55, %vm59
    %v62 = vsel %vm60, 1, 0
    %v63 = vsel %vm61, 1, 0
    %v64 = vcvt.s32.f32 %v62
    %v65 = vcvt.s32.f32 %v63
    %p66 = scmp.le.s32.totalorder %s23, 1
    %p67 = scmp.gt.s32.totalorder %s56, 1
    %p68 = pnand %p66, %p67
    %p69 = pneg %p68
    %s70 = scalar_select %p69, 1, 0
    %s71 = scvt.s32.f32 %s70
    %v72 = vsub.f32 32.0, %v64
    %v73 = vsub.f32 32.0, %v65
    %v74 = vstv %s71
    %v75 = vsub.f32 %v72, %v74
    %v76 = vsub.f32 %v73, %v74
    %v77 = vmul.f32 %v75, -0.019012608
    %v78 = vmul.f32 %v76, -0.019012608
    %v79 = vmul.f32 %v64, -0.09482446
    %v80 = vmul.f32 %v65, -0.09482446
    %v81 = vadd.f32 %v77, %v79
    %v82 = vadd.f32 %v78, %v80
    %v83 = vsub.f32 %v81, %v50
    %v84 = vsub.f32 %v82, %v53
    %v85 = vsel %vm36, %v83, 0.0
    %v86 = vsel %vm37, %v84, 0.0
    %v87 = vld [vmem:[#allocation2] sm:$0xff]
    %v88 = vld [vmem:[#allocation2 + $0x8] sm:$0xff]
    %v89 = vadd.f32 %v87, %v85
    %v90 = vadd.f32 %v88, %v86
    %vm91 = vcmask 7168
    %92 = vst.msk [vmem:[#allocation2] sm:$0xff] %vm91, %v89
    %93 = vst.msk [vmem:[#allocation2 + $0x8] sm:$0xff] %vm91, %v90
    // Predicated region
    $region14: #{tpu_custom_call.1} parent=1 // pred_check
      %p94 = pneg %p12
    $region15: #{tpu_custom_call.1} parent=1 // pred_check_branch
      %96 = sbr.rel (%p94) target = $region17
    $region16: #{tpu_custom_call.1} parent=1 // pred_region
      %vm97 = vcmp.eq.s32.totalorder %v25, 0
      %v98 = vld [vmem:[#allocation2] sm:$0xff]
      %v99 = vld [vmem:[#allocation2 + $0x8] sm:$0xff]
      %v100 = vsel %vm91, %v98, 0.0
      %v101 = vsel %vm91, %v99, 0.0
      %v102 = vadd.f32 %v100, %v101
      %103 = vadd.xlane.f32.xlu0 %v102
      %v104 = vpop.xlane.xlu0 %103
      %v105 = vrot.slane %v104, 4
      %v106 = vadd.f32 %v104, %v105
      %v107 = vrot.slane %v106, 2
      %v108 = vadd.f32 %v106, %v107
      %v109 = vrot.slane %v108, 1
      %v110 = vadd.f32 %v108, %v109
      %s111 = vtos %v110
      %v112 = vstv %s111
      %v113 = vsel %vm97, %v112, 0.0
      %114 = vst [vmem:[#allocation3] sm:$0x1] %v113
    $region17: #{tpu_custom_call.1} parent=1 // pred_fallthru
      _
    // Predicated region
    $region18: #{tpu_custom_call.1} parent=1 // pred_check
      _
    $region19: #{tpu_custom_call.1} parent=1 // pred_check_branch
      %116 = sbr.rel (0) target = $region21
    $region20: #{tpu_custom_call.1} parent=1 // pred_region
      %s118 = ssub.s32 16, 16
      %119 = vsyncadd [#allocation4], %s118
      %s121 = sshll.u32 [#allocation3], 4
      %s122 = int_to_ptr.vmem [resolvable:$true] %s121
      %124 = dma.vmem_to_hbm [thread:$0]  %s122, 16, %s2, [#allocation4]
    $region21: #{tpu_custom_call.1} parent=1 // pred_fallthru
      _
    // Predicated region
    $region22: #{tpu_custom_call.1} parent=1 // pred_check
      _
    $region23: #{tpu_custom_call.1} parent=1 // pred_check_branch
      %126 = sbr.rel (0) target = $region25
    $region24: #{tpu_custom_call.1} parent=1 // pred_region
      %127 = dma.done [#allocation4], 16
    $region25: #{tpu_custom_call.1} parent=1 // pred_fallthru
      _
    %128 = vsyncpa [#allocation4], 1

</llo_original>
